<compile_context>
chip_gen: v7x
topology: tpu7x:2x2x1
jax: 0.10.0
libtpu: 0.0.40
codegen_flags: <defaults>
</compile_context>

<pallas_src>
import functools
import math

import jax
import jax.numpy as jnp
from jax.experimental import pallas as pl
from jax.experimental.pallas import tpu as pltpu

EPS = 1e-07
_LOG_EPS = math.log(EPS)
_LOG_ONE_MINUS_EPS = math.log(1.0 - EPS)

_LANE = 128
_MAX_TILE_ROWS = 2048
_MIN_ROWS_WHOLE_C = 128     # tile the class dim if whole-C rows drop below this
_TARGET_ROWS = 256          # row-tile target once the class dim is tiled
_TEMP_F32_PER_INPUT = 3     # in-kernel f32 temporaries per streamed input row


def _round_up(x, m):
    return ((x + m - 1) // m) * m


def _vmem_budgets():
    """(working-set budget for tiles + temps, vmem_limit_bytes) per generation."""
    cap = None
    try:
        cap = getattr(pltpu.get_tpu_info(), "vmem_capacity_bytes", None)
    except Exception:
        cap = None
    if cap is not None and cap >= 100 * 1024 * 1024:
        # v5e / v6e: 128 MiB physical VMEM -> big streaming tiles.
        return 40 * 1024 * 1024, 64 * 1024 * 1024
    # v7x (64 MiB physical) or unknown: stay conservative.
    return 12 * 1024 * 1024, 32 * 1024 * 1024


def _rows_for_budget(tile_c, itemsize, n_big_inputs, budget):
    """Rows whose double-buffered input tiles + f32 temporaries fit the budget."""
    per_row = n_big_inputs * (2 * tile_c * itemsize
                              + _TEMP_F32_PER_INPUT * tile_c * 4)
    return max(int(budget) // per_row, 1)


def _choose_tiles(n, c, itemsize, n_big_inputs, budget,
                  max_rows=None, max_cols=None):
    """Pick (tile_n, tile_c).  tile_c is whole-C or a multiple of 128."""
    # --- class (lane) tile ---
    tile_c = c
    if c > _LANE:
        if max_cols is not None:
            tile_c = min(c, max(_LANE, (int(max_cols) // _LANE) * _LANE))
        elif _rows_for_budget(c, itemsize, n_big_inputs, budget) < _MIN_ROWS_WHOLE_C:
            # Whole-C rows would be tiny: tile the class dim (online LSE) so
            # row tiles can reach ~_TARGET_ROWS and f32 temporaries stay bounded.
            per_col = n_big_inputs * (2 * itemsize + _TEMP_F32_PER_INPUT * 4)
            tc = int(budget) // (_TARGET_ROWS * per_col)
            tile_c = min(c, max(_LANE, (tc // _LANE) * _LANE))
    if tile_c >= c:
        tile_c = c

    # --- batch (sublane) tile ---
    t = _rows_for_budget(tile_c, itemsize, n_big_inputs, budget)
    t = min(t, _MAX_TILE_ROWS)
    if max_rows is not None:
        t = min(t, int(max_rows))
    # Never collapse to a single block: keep ~>=4 batch tiles so the pipeline
    # double-buffers and the "parallel" axis can be split across v7x cores.
    t = min(t, _round_up(pl.cdiv(n, 4), 8))
    t = max((int(t) // 8) * 8, 8)
    if n < 8:
        t = n               # block dim == full array dim is always legal
    return t, tile_c


def _stream_spec(block_shape, index_map, deep):
    if deep:
        # Small tiles + long grid: a third buffer hides exposed DMA latency.
        return pl.BlockSpec(block_shape, index_map, pipeline_mode=pl.Buffered(3))
    return pl.BlockSpec(block_shape, index_map)


# ---------------------------------------------------------------------------
# kernels
# ---------------------------------------------------------------------------
def _ce_loss_kernel(x_ref, t_ref, part_ref, m_sc, l_sc, xt_sc, *,
                    n_rows, n_cols, tile_n, tile_c, n_col_tiles):
    i = pl.program_id(0)
    k = pl.program_id(1)

    @pl.when(k == 0)
    def _():
        m_sc[...] = jnp.full((tile_n, 1), -jnp.inf, jnp.float32)
        l_sc[...] = jnp.zeros((tile_n, 1), jnp.float32)
        xt_sc[...] = jnp.zeros((tile_n, 1), jnp.float32)

    x = x_ref[...].astype(jnp.float32)                       # (tile_n, tile_c)
    cls = jax.lax.broadcasted_iota(jnp.int32, (tile_n, tile_c), 1) + k * tile_c
    if n_cols % tile_c != 0:                                  # ragged class tile
        x = jnp.where(cls < n_cols, x, -1e30)

    # online max / sum-exp over the class tiles (flash-style LSE)
    # TODO(synk): on v5e, offload these lane reductions to the idle MXU via a
    #             matvec against a ones (tile_c, 1) vector to relieve the VALU.
    m_new = jnp.maximum(m_sc[...], jnp.max(x, axis=1, keepdims=True))
    l_sc[...] = l_sc[...] * jnp.exp(m_sc[...] - m_new) + jnp.sum(
        jnp.exp(x - m_new), axis=1, keepdims=True)
    m_sc[...] = m_new
    # target logit: the target class lives in exactly one class tile
    t = t_ref[...]                                            # (tile_n, 1) int32
    xt_sc[...] += jnp.sum(jnp.where(cls == t, x, 0.0), axis=1, keepdims=True)

    @pl.when(k == n_col_tiles - 1)
    def _():
        nll = m_sc[...] + jnp.log(l_sc[...]) - xt_sc[...]     # (tile_n, 1)
        if n_rows % tile_n != 0:                              # ragged batch tile
            row = jax.lax.broadcasted_iota(jnp.int32, (tile_n, 1), 0) + i * tile_n
            nll = jnp.where(row < n_rows, nll, 0.0)
        part_ref[...] = jnp.full((8, 128), jnp.sum(nll), dtype=jnp.float32)


def _weighted_loss_kernel(x_ref, w_ref, part_ref, m_sc, l_sc, acc_sc, *,
                          n_rows, n_cols, tile_n, tile_c, n_col_tiles):
    i = pl.program_id(0)
    k = pl.program_id(1)
    ragged_c = (n_cols % tile_c != 0)

    @pl.when(k == 0)
    def _():
        m_sc[...] = jnp.full((tile_n, 1), -jnp.inf, jnp.float32)
        l_sc[...] = jnp.zeros((tile_n, 1), jnp.float32)
        acc_sc[...] = jnp.zeros((tile_n, 1), jnp.float32)

    x = x_ref[...].astype(jnp.float32)                        # (tile_n, tile_c)

    # pass 1 (k in [0, n_col_tiles)): online max / LSE over the class tiles
    @pl.when(k < n_col_tiles)
    def _():
        xs = x
        if ragged_c:
            cls = (jax.lax.broadcasted_iota(jnp.int32, (tile_n, tile_c), 1)
                   + k * tile_c)
            xs = jnp.where(cls < n_cols, x, -1e30)
        m_new = jnp.maximum(m_sc[...], jnp.max(xs, axis=1, keepdims=True))
        l_sc[...] = l_sc[...] * jnp.exp(m_sc[...] - m_new) + jnp.sum(
            jnp.exp(xs - m_new), axis=1, keepdims=True)
        m_sc[...] = m_new

    # LSE is final: fold log(l) into m so pass 2 reads a single logZ value.
    @pl.when(k == n_col_tiles)
    def _():
        m_sc[...] = m_sc[...] + jnp.log(l_sc[...])

    # pass 2 (k in [n_col_tiles, 2*n_col_tiles)): clamp in log space and
    # accumulate sum(w * log(clip(softmax(x), eps, 1-eps))).
    @pl.when(k >= n_col_tiles)
    def _():
        kc = k - n_col_tiles
        w = w_ref[...].astype(jnp.float32)
        logp = jnp.clip(x - m_sc[...], _LOG_EPS, _LOG_ONE_MINUS_EPS)
        contrib = w * logp
        if ragged_c:
            cls = (jax.lax.broadcasted_iota(jnp.int32, (tile_n, tile_c), 1)
                   + kc * tile_c)
            contrib = jnp.where(cls < n_cols, contrib, 0.0)
        # TODO(synk): on v5e, route this lane reduction through the MXU
        #             (jnp.dot(contrib, ones[(tile_c, 1)])) to relieve the VALU.
        acc_sc[...] += jnp.sum(contrib, axis=1, keepdims=True)

    @pl.when(k == 2 * n_col_tiles - 1)
    def _():
        per_sample = acc_sc[...]
        if n_rows % tile_n != 0:                              # ragged batch tile
            row = jax.lax.broadcasted_iota(jnp.int32, (tile_n, 1), 0) + i * tile_n
            per_sample = jnp.where(row < n_rows, per_sample, 0.0)
        part_ref[...] = jnp.full((8, 128), jnp.sum(per_sample), dtype=jnp.float32)


# ---------------------------------------------------------------------------
# pallas_call plumbing
# ---------------------------------------------------------------------------
def _partials_call(kernel, grid, in_specs, inputs, tile_n, n_batch_tiles,
                   vmem_limit, cost):
    partials = pl.pallas_call(
        kernel,
        out_shape=jax.ShapeDtypeStruct((n_batch_tiles * 8, 128), jnp.float32),
        grid=grid,
        in_specs=in_specs,
        out_specs=pl.BlockSpec((8, 128), lambda i, k: (i, 0)),
        scratch_shapes=[pltpu.VMEM((tile_n, 1), jnp.float32)] * 3,
        compiler_params=pltpu.CompilerParams(
            dimension_semantics=("parallel", "arbitrary"),
            vmem_limit_bytes=vmem_limit),
        cost_estimate=cost,
    )(*inputs)
    # one scalar per batch tile lives at [tile, 0, 0]
    return jnp.sum(partials.reshape(n_batch_tiles, 8, 128)[:, 0, 0])


def loss_function(outputs, targets, weights=None,
                  max_rows_per_tile=None, max_cols_per_tile=None):
    """Pallas implementation of LossFunction.forward.

    outputs: (N, C) float logits (f32 or bf16 — no wrapper-side cast)
    targets: (N,)   int class indices (only used when weights is None)
    weights: (N, C) float soft targets / per-class weights, or None
    Returns a scalar float32 loss.
    """
    n, c = outputs.shape
    itemsize = jnp.dtype(outputs.dtype).itemsize
    budget, vmem_limit = _vmem_budgets()

    if weights is None:
        tile_n, tile_c = _choose_tiles(n, c, itemsize, 1, budget,
                                       max_rows_per_tile, max_cols_per_tile)
        nb, kc = pl.cdiv(n, tile_n), pl.cdiv(c, tile_c)
        deep = (tile_n <= 32 and kc > 1)
        tgt = targets.astype(jnp.int32).reshape(n, 1)
        kernel = functools.partial(
            _ce_loss_kernel, n_rows=n, n_cols=c,
            tile_n=tile_n, tile_c=tile_c, n_col_tiles=kc)
        in_specs = [
            _stream_spec((tile_n, tile_c), lambda i, k: (i, k), deep),
            pl.BlockSpec((tile_n, 1), lambda i, k: (i, 0)),
        ]
        cost = pl.CostEstimate(
            flops=6 * n * c, transcendentals=n * c,
            bytes_accessed=n * c * itemsize + n * 4 + nb * 8 * 128 * 4)
        total = _partials_call(kernel, (nb, kc), in_specs, [outputs, tgt],
                               tile_n, nb, vmem_limit, cost)
        return total / n                                   # reduction='mean'

    w_itemsize = jnp.dtype(weights.dtype).itemsize
    tile_n, tile_c = _choose_tiles(n, c, max(itemsize, w_itemsize), 2, budget,
                                   max_rows_per_tile, max_cols_per_tile)
    nb, kc = pl.cdiv(n, tile_n), pl.cdiv(c, tile_c)
    deep = (tile_n <= 32 and kc > 1)
    kernel = functools.partial(
        _weighted_loss_kernel, n_rows=n, n_cols=c,
        tile_n=tile_n, tile_c=tile_c, n_col_tiles=kc)
    x_map = lambda i, k: (i, k % kc)                     # same block order both passes
    w_map = lambda i, k: (i, jnp.maximum(k - kc, 0))     # only needed in pass 2
    in_specs = [
        _stream_spec((tile_n, tile_c), x_map, deep),
        _stream_spec((tile_n, tile_c), w_map, deep),
    ]
    x_passes = 1 if kc == 1 else 2
    cost = pl.CostEstimate(
        flops=10 * n * c, transcendentals=n * c + n,
        bytes_accessed=n * c * (itemsize * x_passes + w_itemsize)
        + nb * 8 * 128 * 4)
    total = _partials_call(kernel, (nb, 2 * kc), in_specs, [outputs, weights],
                           tile_n, nb, vmem_limit, cost)
    return -(total / n)


# ---------------------------------------------------------------------------
# pure-JAX reference (for correctness check only)
# ---------------------------------------------------------------------------
def _ref_loss(outputs, targets, weights=None):
    outputs = outputs.astype(jnp.float32)
    if weights is None:
        logp = jax.nn.log_softmax(outputs, axis=1)
        nll = -jnp.take_along_axis(
            logp, targets.astype(jnp.int32)[:, None], axis=1
        )[:, 0]
        return jnp.mean(nll)
    p = jax.nn.softmax(outputs, axis=1)
    p = jnp.clip(p, EPS, 1.0 - EPS)
    return -jnp.mean(jnp.sum(weights.astype(jnp.float32) * jnp.log(p), axis=1))


if __name__ == "__main__":
    key = jax.random.PRNGKey(0)
    ks = jax.random.split(key, 9)

    # 1) Small shapes, single class tile (batch=8, classes=32).
    N, C = 8, 32
    outputs = jax.random.normal(ks[0], (N, C), dtype=jnp.float32)
    targets = jax.random.randint(ks[1], (N,), 0, C, dtype=jnp.int32)
    weights = jax.nn.softmax(jax.random.normal(ks[2], (N, C), dtype=jnp.float32), axis=1)

    loss_ce = loss_function(outputs, targets, None)
    loss_w = loss_function(outputs, targets, weights)
    jax.block_until_ready((loss_ce, loss_w))
    assert jnp.allclose(loss_ce, _ref_loss(outputs, targets, None),
                        rtol=1e-5, atol=1e-5), loss_ce
    assert jnp.allclose(loss_w, _ref_loss(outputs, targets, weights),
                        rtol=1e-5, atol=1e-5), loss_w

    # 2) Multi batch-tile path with a ragged last tile (row masking).
    N2, C2 = 40, 160
    outputs2 = jax.random.normal(ks[3], (N2, C2), dtype=jnp.float32)
    targets2 = jax.random.randint(ks[4], (N2,), 0, C2, dtype=jnp.int32)
    weights2 = jax.nn.softmax(jax.random.normal(ks[5], (N2, C2), dtype=jnp.float32), axis=1)

    loss_ce2 = loss_function(outputs2, targets2, None, max_rows_per_tile=16)
    loss_w2 = loss_function(outputs2, targets2, weights2, max_rows_per_tile=16)
    jax.block_until_ready((loss_ce2, loss_w2))
    assert jnp.allclose(loss_ce2, _ref_loss(outputs2, targets2, None),
                        rtol=1e-5, atol=1e-5), loss_ce2
    assert jnp.allclose(loss_w2, _ref_loss(outputs2, targets2, weights2),
                        rtol=1e-5, atol=1e-5), loss_w2

    # 3) Class-dim tiling path (online LSE + two-pass weighted clamp), ragged
    #    in both rows and class columns, small tiles -> Buffered(3) inputs.
    N3, C3 = 40, 300
    outputs3 = jax.random.normal(ks[6], (N3, C3), dtype=jnp.float32)
    targets3 = jax.random.randint(ks[7], (N3,), 0, C3, dtype=jnp.int32)
    weights3 = jax.nn.softmax(jax.random.normal(ks[8], (N3, C3), dtype=jnp.float32), axis=1)

    loss_ce3 = loss_function(outputs3, targets3, None,
                             max_rows_per_tile=16, max_cols_per_tile=128)
    loss_w3 = loss_function(outputs3, targets3, weights3,
                            max_rows_per_tile=16, max_cols_per_tile=128)
    jax.block_until_ready((loss_ce3, loss_w3))
    assert jnp.allclose(loss_ce3, _ref_loss(outputs3, targets3, None),
                        rtol=1e-5, atol=1e-5), loss_ce3
    assert jnp.allclose(loss_w3, _ref_loss(outputs3, targets3, weights3),
                        rtol=1e-5, atol=1e-5), loss_w3

    # 4) bf16 logits (no wrapper pre-cast; kernel casts on the VPU).
    N4, C4 = 32, 96
    outputs4 = jax.random.normal(jax.random.PRNGKey(1), (N4, C4)).astype(jnp.bfloat16)
    targets4 = jax.random.randint(jax.random.PRNGKey(2), (N4,), 0, C4, dtype=jnp.int32)
    weights4 = jax.nn.softmax(
        jax.random.normal(jax.random.PRNGKey(3), (N4, C4), dtype=jnp.float32), axis=1)

    loss_ce4 = loss_function(outputs4, targets4, None)
    loss_w4 = loss_function(outputs4, targets4, weights4)
    jax.block_until_ready((loss_ce4, loss_w4))
    assert jnp.allclose(loss_ce4, _ref_loss(outputs4, targets4, None),
                        rtol=1e-4, atol=1e-4), loss_ce4
    assert jnp.allclose(loss_w4, _ref_loss(outputs4, targets4, weights4),
                        rtol=1e-4, atol=1e-4), loss_w4

    print("KERNEL_OK")
</pallas_src>

<mosaic_0001>
module attributes {stable_mosaic.version = 11 : i64} {
  func.func @_ce_loss_kernel(%arg0: i32, %arg1: i32, %arg2: memref<8x32xf32, #tpu.memory_space<vmem>>, %arg3: memref<8x1xi32, #tpu.memory_space<vmem>>, %arg4: memref<8x128xf32, #tpu.memory_space<vmem>>, %arg5: memref<8x1xf32, #tpu.memory_space<vmem>>, %arg6: memref<8x1xf32, #tpu.memory_space<vmem>>, %arg7: memref<8x1xf32, #tpu.memory_space<vmem>>) attributes {dimension_semantics = [#tpu.dimension_semantics<parallel>, #tpu.dimension_semantics<arbitrary>], iteration_bounds = array<i64: 1, 1>, scalar_prefetch = 0 : i64, scratch_operands = 3 : i64, tpu.core_type = #tpu.core_type<tc>, window_params = [{transform_indices = @transform_0, window_bounds = array<i64: 8, 32>}, {transform_indices = @transform_1, window_bounds = array<i64: 8, 1>}, {transform_indices = @transform_2, window_bounds = array<i64: 8, 128>}]} {
    %c0_i32 = arith.constant 0 : i32
    %0 = arith.cmpi eq, %arg1, %c0_i32 : i32
    %1 = arith.extui %0 : i1 to i32
    %c0_i32_0 = arith.constant 0 : i32
    %2 = arith.cmpi ne, %1, %c0_i32_0 : i32
    scf.if %2 {
      %cst_23 = arith.constant 0xFF800000 : f32
      %38 = vector.broadcast %cst_23 : f32 to vector<8x1xf32>
      %c0_24 = arith.constant 0 : index
      %c0_25 = arith.constant 0 : index
      %39 = vector.load %arg5[%c0_24, %c0_25] : memref<8x1xf32, #tpu.memory_space<vmem>>, vector<8x1xf32>
      tpu.vector_store %arg5[%c0_24, %c0_25], %38 {strides = array<i32>} : memref<8x1xf32, #tpu.memory_space<vmem>>, vector<8x1xf32>,
      %cst_26 = arith.constant 0.000000e+00 : f32
      %40 = vector.broadcast %cst_26 : f32 to vector<8x1xf32>
      %c0_27 = arith.constant 0 : index
      %c0_28 = arith.constant 0 : index
      %41 = vector.load %arg6[%c0_27, %c0_28] : memref<8x1xf32, #tpu.memory_space<vmem>>, vector<8x1xf32>
      tpu.vector_store %arg6[%c0_27, %c0_28], %40 {strides = array<i32>} : memref<8x1xf32, #tpu.memory_space<vmem>>, vector<8x1xf32>,
      %cst_29 = arith.constant 0.000000e+00 : f32
      %42 = vector.broadcast %cst_29 : f32 to vector<8x1xf32>
      %c0_30 = arith.constant 0 : index
      %c0_31 = arith.constant 0 : index
      %43 = vector.load %arg7[%c0_30, %c0_31] : memref<8x1xf32, #tpu.memory_space<vmem>>, vector<8x1xf32>
      tpu.vector_store %arg7[%c0_30, %c0_31], %42 {strides = array<i32>} : memref<8x1xf32, #tpu.memory_space<vmem>>, vector<8x1xf32>,
    } else {
    }
    %c0 = arith.constant 0 : index
    %c0_1 = arith.constant 0 : index
    %3 = vector.load %arg2[%c0, %c0_1] : memref<8x32xf32, #tpu.memory_space<vmem>>, vector<8x32xf32>
    %4 = tpu.iota {dimensions = array<i32: 1>} : vector<8x32xi32>
    %c32_i32 = arith.constant 32 : i32
    %5 = arith.muli %arg1, %c32_i32 : i32
    %6 = vector.broadcast %5 : i32 to vector<8x32xi32>
    %7 = arith.addi %4, %6 : vector<8x32xi32>
    %c0_2 = arith.constant 0 : index
    %c0_3 = arith.constant 0 : index
    %8 = vector.load %arg5[%c0_2, %c0_3] : memref<8x1xf32, #tpu.memory_space<vmem>>, vector<8x1xf32>
    %cst = arith.constant dense<0xFF800000> : vector<8xf32>
    %9 = vector.multi_reduction <maximumf>, %3, %cst [1] : vector<8x32xf32> to vector<8xf32>
    %10 = vector.shape_cast %9 : vector<8xf32> to vector<8x1xf32>
    %11 = arith.maximumf %8, %10 : vector<8x1xf32>
    %c0_4 = arith.constant 0 : index
    %c0_5 = arith.constant 0 : index
    %12 = vector.load %arg6[%c0_4, %c0_5] : memref<8x1xf32, #tpu.memory_space<vmem>>, vector<8x1xf32>
    %c0_6 = arith.constant 0 : index
    %c0_7 = arith.constant 0 : index
    %13 = vector.load %arg5[%c0_6, %c0_7] : memref<8x1xf32, #tpu.memory_space<vmem>>, vector<8x1xf32>
    %14 = arith.subf %13, %11 : vector<8x1xf32>
    %15 = math.exp %14 : vector<8x1xf32>
    %16 = arith.mulf %12, %15 : vector<8x1xf32>
    %17 = vector.broadcast %11 : vector<8x1xf32> to vector<8x32xf32>
    %18 = arith.subf %3, %17 : vector<8x32xf32>
    %19 = math.exp %18 : vector<8x32xf32>
    %cst_8 = arith.constant dense<0.000000e+00> : vector<8xf32>
    %20 = vector.multi_reduction <add>, %19, %cst_8 [1] : vector<8x32xf32> to vector<8xf32>
    %21 = vector.shape_cast %20 : vector<8xf32> to vector<8x1xf32>
    %22 = arith.addf %16, %21 : vector<8x1xf32>
    %c0_9 = arith.constant 0 : index
    %c0_10 = arith.constant 0 : index
    %23 = vector.load %arg6[%c0_9, %c0_10] : memref<8x1xf32, #tpu.memory_space<vmem>>, vector<8x1xf32>
    tpu.vector_store %arg6[%c0_9, %c0_10], %22 {strides = array<i32>} : memref<8x1xf32, #tpu.memory_space<vmem>>, vector<8x1xf32>,
    %c0_11 = arith.constant 0 : index
    %c0_12 = arith.constant 0 : index
    %24 = vector.load %arg5[%c0_11, %c0_12] : memref<8x1xf32, #tpu.memory_space<vmem>>, vector<8x1xf32>
    tpu.vector_store %arg5[%c0_11, %c0_12], %11 {strides = array<i32>} : memref<8x1xf32, #tpu.memory_space<vmem>>, vector<8x1xf32>,
    %c0_13 = arith.constant 0 : index
    %c0_14 = arith.constant 0 : index
    %25 = vector.load %arg3[%c0_13, %c0_14] : memref<8x1xi32, #tpu.memory_space<vmem>>, vector<8x1xi32>
    %c0_15 = arith.constant 0 : index
    %c0_16 = arith.constant 0 : index
    %26 = vector.load %arg7[%c0_15, %c0_16] : memref<8x1xf32, #tpu.memory_space<vmem>>, vector<8x1xf32>
    %27 = vector.broadcast %25 : vector<8x1xi32> to vector<8x32xi32>
    %28 = arith.cmpi eq, %7, %27 : vector<8x32xi32>
    %cst_17 = arith.constant 0.000000e+00 : f32
    %29 = vector.broadcast %cst_17 : f32 to vector<8x32xf32>
    %30 = arith.select %28, %3, %29 : vector<8x32xi1>, vector<8x32xf32>
    %cst_18 = arith.constant dense<0.000000e+00> : vector<8xf32>
    %31 = vector.multi_reduction <add>, %30, %cst_18 [1] : vector<8x32xf32> to vector<8xf32>
    %32 = vector.shape_cast %31 : vector<8xf32> to vector<8x1xf32>
    %33 = arith.addf %26, %32 : vector<8x1xf32>
    %c0_19 = arith.constant 0 : index
    %c0_20 = arith.constant 0 : index
    %34 = vector.load %arg7[%c0_19, %c0_20] : memref<8x1xf32, #tpu.memory_space<vmem>>, vector<8x1xf32>
    tpu.vector_store %arg7[%c0_19, %c0_20], %33 {strides = array<i32>} : memref<8x1xf32, #tpu.memory_space<vmem>>, vector<8x1xf32>,
    %c0_i32_21 = arith.constant 0 : i32
    %35 = arith.cmpi eq, %arg1, %c0_i32_21 : i32
    %36 = arith.extui %35 : i1 to i32
    %c0_i32_22 = arith.constant 0 : i32
    %37 = arith.cmpi ne, %36, %c0_i32_22 : i32
    scf.if %37 {
      %c0_23 = arith.constant 0 : index
      %c0_24 = arith.constant 0 : index
      %38 = vector.load %arg5[%c0_23, %c0_24] : memref<8x1xf32, #tpu.memory_space<vmem>>, vector<8x1xf32>
      %c0_25 = arith.constant 0 : index
      %c0_26 = arith.constant 0 : index
      %39 = vector.load %arg6[%c0_25, %c0_26] : memref<8x1xf32, #tpu.memory_space<vmem>>, vector<8x1xf32>
      %40 = math.log %39 : vector<8x1xf32>
      %41 = arith.addf %38, %40 : vector<8x1xf32>
      %c0_27 = arith.constant 0 : index
      %c0_28 = arith.constant 0 : index
      %42 = vector.load %arg7[%c0_27, %c0_28] : memref<8x1xf32, #tpu.memory_space<vmem>>, vector<8x1xf32>
      %43 = arith.subf %41, %42 : vector<8x1xf32>
      %44 = vector.shape_cast %43 : vector<8x1xf32> to vector<1x8x1xf32>
      %cst_29 = arith.constant dense<0.000000e+00> : vector<1xf32>
      %45 = vector.multi_reduction <add>, %44, %cst_29 [1, 2] : vector<1x8x1xf32> to vector<1xf32>
      %46 = vector.shape_cast %45 : vector<1xf32> to vector<1x1x1xf32>
      %47 = vector.extract %46[0, 0, 0] : f32 from vector<1x1x1xf32>
      %48 = vector.broadcast %47 : f32 to vector<8x128xf32>
      %c0_30 = arith.constant 0 : index
      %c0_31 = arith.constant 0 : index
      %49 = vector.load %arg4[%c0_30, %c0_31] : memref<8x128xf32, #tpu.memory_space<vmem>>, vector<8x128xf32>
      tpu.vector_store %arg4[%c0_30, %c0_31], %48 {strides = array<i32>} : memref<8x128xf32, #tpu.memory_space<vmem>>, vector<8x128xf32>,
    } else {
    }
    return
  }
  func.func @transform_0(%arg0: i32, %arg1: i32) -> (i32, i32) {
    %c0_i32 = arith.constant 0 : i32
    return %arg0, %arg1 : i32, i32
  }
  func.func @transform_1(%arg0: i32, %arg1: i32) -> (i32, i32) {
    %c0_i32 = arith.constant 0 : i32
    %c0_i32_0 = arith.constant 0 : i32
    return %arg0, %c0_i32 : i32, i32
  }
  func.func @transform_2(%arg0: i32, %arg1: i32) -> (i32, i32) {
    %c0_i32 = arith.constant 0 : i32
    %c0_i32_0 = arith.constant 0 : i32
    return %arg0, %c0_i32 : i32, i32
  }
}

</mosaic_0001>

<llo_original>
// kernel: tpu_custom_call.1
$region0: #{tpu_custom_call.1}
  #allocation0 [shape = 'u32[]', space=smem, size = 0x4, offset = 0x4, fixed_abs, tag = 'smem constant byte address 0x4 - core index']
  #allocation1 [shape = 'u32[144,128]{1,0:T(1,128)}', space=vmem, size = 0x12000, scoped, tag = 'internal scratch']
  #allocation2 [shape = 'f32[8,1]{1,0:T(8,128)}', space=vmem, size = 0x1000, scoped, tag = 'scratch operand']
  #allocation3 [shape = 'f32[8,1]{1,0:T(8,128)}', space=vmem, size = 0x1000, scoped, tag = 'scratch operand']
  #allocation4 [shape = 'f32[8,1]{1,0:T(8,128)}', space=vmem, size = 0x1000, scoped, tag = 'scratch operand']
  %s0 = inlined_call_operand.vmem [shape: f32[8,32], index: 0, kind: input, shape index: {}]
  %s1 = inlined_call_operand.vmem [shape: s32[8,1], index: 1, kind: input, shape index: {}]
  %s2 = inlined_call_operand.hbm [shape: f32[8,128], index: 2, kind: output, shape index: {}]
  %s3 = sld [smem:[#allocation0]]
  $region26: #{tpu_custom_call.1} parent=0
    _
  %s5 = ssub.s32 1, %s3
  %s6 = scalar_select 0, %s5, %s3
  $region1: #{tpu_custom_call.1} parent=0
    #allocation5 [shape = 'u8[4096]{0}', space=vmem, size = 0x1000, scoped, tag = 'output window, operand 0, single buffered']
    #allocation6 [shape = 's32[1]{0}', space=sflag, size = 0x4, scoped, tag = 'scoped memory for tpu_custom_call.1']
    %7 = vsyncpa [#allocation6], 0
    // Predicated region
    $region2: #{tpu_custom_call.1} parent=1 // pred_check
      _
    $region3: #{tpu_custom_call.1} parent=1 // pred_check_branch
      %9 = sbr.rel (0) target = $region5
    $region4: #{tpu_custom_call.1} parent=1 // pred_region
      _
    $region5: #{tpu_custom_call.1} parent=1 // pred_fallthru
      _
    // Predicated region
    $region6: #{tpu_custom_call.1} parent=1 // pred_check
      _
    $region7: #{tpu_custom_call.1} parent=1 // pred_check_branch
      %11 = sbr.rel (0) target = $region9
    $region8: #{tpu_custom_call.1} parent=1 // pred_region
      _
    $region9: #{tpu_custom_call.1} parent=1 // pred_fallthru
      _
    %p12 = scmp.eq.s32.totalorder 0, 0
    // Predicated region
    $region10: #{tpu_custom_call.1} parent=1 // pred_check
      %p13 = pneg %p12
    $region11: #{tpu_custom_call.1} parent=1 // pred_check_branch
      %15 = sbr.rel (%p13) target = $region13
    $region12: #{tpu_custom_call.1} parent=1 // pred_region
      %vm16 = vcmask 7168
      %17 = vst.msk [vmem:[#allocation2] sm:$0xff] %vm16, -inf
      %18 = vst.msk [vmem:[#allocation3] sm:$0xff] %vm16, 0.0
      %19 = vst.msk [vmem:[#allocation4] sm:$0xff] %vm16, 0.0
    $region13: #{tpu_custom_call.1} parent=1 // pred_fallthru
      _
    %v20 = vld [vmem:[%s0] sm:$0xff]
    %v21 = vlaneseq
    %v22 = vand.u32 %v21, 127
    %s23 = smul.u32 0, 32
    %v24 = vstv %s23
    %v25 = vadd.s32 %v22, %v24
    %v26 = vld [vmem:[#allocation2] sm:$0xff]
    %vm27 = vcmask 261120
    %v28 = vsel %vm27, %v20, -inf
    %29 = vmax.xlane.f32.xlu0 %v28
    %v30 = vpop.xlane.xlu0 %29
    %v31 = vmax.f32 %v26, %v30
    %v32 = vld [vmem:[#allocation3] sm:$0xff]
    %v33 = vsub.f32 %v26, %v31
    %v34 = vmul.f32 %v33, 1.442695
    %v35 = vpow.pop %v34
    %v36 = vmul.f32 %v32, %v35
    %38 = vset.pattern.permute.xlu0 0
    %39 = vperm.xlu0 %38, %v31
    %v40 = vpop.permute.xlu0 %39
    %v42 = vsub.f32 %v20, %v40
    %v43 = vmul.f32 %v42, 1.442695
    %v44 = vpow.pop %v43
    %v45 = vsel %vm27, %v44, 0.0
    %46 = vadd.xlane.f32.xlu0 %v45
    %v47 = vpop.xlane.xlu0 %46
    %v48 = vadd.f32 %v36, %v47
    %vm49 = vcmask 7168
    %50 = vst.msk [vmem:[#allocation3] sm:$0xff] %vm49, %v48
    %51 = vst.msk [vmem:[#allocation2] sm:$0xff] %vm49, %v31
    %v52 = vld [vmem:[%s1] sm:$0xff]
    %v53 = vld [vmem:[#allocation4] sm:$0xff]
    %54 = vset.pattern.permute.xlu0 0
    %55 = vperm.xlu0 %54, %v52
    %v56 = vpop.permute.xlu0 %55
    %vm57 = vcmp.eq.s32.totalorder %v25, %v56
    %v58 = vsel %vm57, %v20, 0.0
    %v59 = vsel %vm27, %v58, 0.0
    %60 = vadd.xlane.f32.xlu0 %v59
    %v61 = vpop.xlane.xlu0 %60
    %v62 = vadd.f32 %v53, %v61
    %63 = vst.msk [vmem:[#allocation4] sm:$0xff] %vm49, %v62
    // Predicated region
    $region14: #{tpu_custom_call.1} parent=1 // pred_check
      %p64 = pneg %p12
    $region15: #{tpu_custom_call.1} parent=1 // pred_check_branch
      %66 = sbr.rel (%p64) target = $region17
    $region16: #{tpu_custom_call.1} parent=1 // pred_region
      %v67 = vld [vmem:[#allocation2] sm:$0xff]
      %v68 = vld [vmem:[#allocation3] sm:$0xff]
      %v69 = vlog2.pop %v68
      %v70 = vmul.f32 %v69, 0.6931472
      %v71 = vadd.f32 %v67, %v70
      %v72 = vld [vmem:[#allocation4] sm:$0xff]
      %v73 = vsub.f32 %v71, %v72
      %v74 = vsel %vm49, %v73, 0.0
      %75 = vadd.xlane.f32.xlu0 %v74
      %v76 = vpop.xlane.xlu0 %75
      %v77 = vrot.slane %v76, 4
      %v78 = vadd.f32 %v76, %v77
      %v79 = vrot.slane %v78, 2
      %v80 = vadd.f32 %v78, %v79
      %v81 = vrot.slane %v80, 1
      %v82 = vadd.f32 %v80, %v81
      %s83 = vtos %v82
      %v84 = vstv %s83
      %85 = vst [vmem:[#allocation5] sm:$0xff] %v84
    $region17: #{tpu_custom_call.1} parent=1 // pred_fallthru
      _
    // Predicated region
    $region18: #{tpu_custom_call.1} parent=1 // pred_check
      _
    $region19: #{tpu_custom_call.1} parent=1 // pred_check_branch
      %87 = sbr.rel (0) target = $region21
    $region20: #{tpu_custom_call.1} parent=1 // pred_region
      %s89 = ssub.s32 128, 128
      %90 = vsyncadd [#allocation6], %s89
      %s92 = sshll.u32 [#allocation5], 4
      %s93 = int_to_ptr.vmem [resolvable:$true] %s92
      %95 = dma.vmem_to_hbm [thread:$0]  %s93, 128, %s2, [#allocation6]
    $region21: #{tpu_custom_call.1} parent=1 // pred_fallthru
      _
    // Predicated region
    $region22: #{tpu_custom_call.1} parent=1 // pred_check
      _
    $region23: #{tpu_custom_call.1} parent=1 // pred_check_branch
      %97 = sbr.rel (0) target = $region25
    $region24: #{tpu_custom_call.1} parent=1 // pred_region
      %98 = dma.done [#allocation6], 128
    $region25: #{tpu_custom_call.1} parent=1 // pred_fallthru
      _
    %99 = vsyncpa [#allocation6], 1

</llo_original>
